<compile_context>
chip_gen: v5e
topology: v5e:2x2
jax: 0.10.0
libtpu: 0.0.40
codegen_flags: <defaults>
</compile_context>

<pallas_src>
import jax
import jax.numpy as jnp
from jax.experimental import pallas as pl
from jax.experimental.pallas import tpu as pltpu


# ----------------------------------------------------------------------------
# Conv stage kernel:
#   Conv1d(1->8, k=3, pad=1) + ReLU + BatchNorm1d(8)
#   Conv1d(8->32, k=3, pad=1) + ReLU + BatchNorm1d(32)
# One grid step processes one batch row with the full length resident in VMEM.
# ----------------------------------------------------------------------------
def _conv_kernel(x_ref, w1_ref, b1_ref, s1_ref, t1_ref,
                 w2_ref, b2_ref, s2_ref, t2_ref, o_ref):
    L = x_ref.shape[-1]

    # Hoisted edge masks: computed once per grid step, reused for both tap
    # expansions (JAX does not CSE broadcast_in_dim).
    lane = jax.lax.broadcasted_iota(jnp.int32, (1, L), 1)
    is_first = lane == 0
    is_last = lane == (L - 1)

    def taps(v):
        # Returns (v[l-1], v[l], v[l+1]) along the lane axis with zero padding,
        # i.e. the three taps of a k=3, padding=1 Conv1d. pltpu.roll only takes
        # non-negative shifts, so shift by L-1 to realize a -1 rotation.
        v_m1 = jnp.where(is_first, 0.0, pltpu.roll(v, 1, v.ndim - 1))
        v_p1 = jnp.where(is_last, 0.0, pltpu.roll(v, L - 1, v.ndim - 1))
        return (v_m1, v, v_p1)

    x = x_ref[0]                       # (1, L)   (C_in == 1)
    x_m1, x_0, x_p1 = taps(x)
    w1 = w1_ref[...]                   # (8, 3)

    # Conv1d(1, 8, 3, padding=1): C_in == 1 -> per-tap scalar broadcast (VPU).
    h1 = (b1_ref[...]                                  # (8, 1) broadcasts
          + w1[:, 0:1] * x_m1
          + w1[:, 1:2] * x_0
          + w1[:, 2:3] * x_p1)                         # (8, L)
    h1 = jnp.maximum(h1, 0.0)                          # ReLU
    h1 = h1 * s1_ref[...] + t1_ref[...]                # BatchNorm1d(8), folded

    # Conv1d(8, 32, 3, padding=1) as ONE fused MXU matmul:
    # stack the three taps along the channel axis -> (24, L) and multiply by
    # the pre-reshaped (32, 24) weight (tap-major, channel-minor columns).
    h1_m1, h1_0, h1_p1 = taps(h1)
    h1_cat = jnp.concatenate([h1_m1, h1_0, h1_p1], axis=0)        # (24, L)
    h2 = b2_ref[...] + jnp.dot(w2_ref[...], h1_cat,
                               preferred_element_type=jnp.float32)  # (32, L)
    h2 = jnp.maximum(h2, 0.0)                          # ReLU
    h2 = h2 * s2_ref[...] + t2_ref[...]                # BatchNorm1d(32), folded

    o_ref[0] = h2


def conv_stage(x_ncl, w1, b1, s1, t1, w2_cat, b2, s2, t2):
    B, c_in, L = x_ncl.shape
    assert c_in == 1
    c_out = w2_cat.shape[0]

    def full_spec(arr):
        return pl.BlockSpec(arr.shape, lambda b: (0,) * arr.ndim)

    return pl.pallas_call(
        _conv_kernel,
        out_shape=jax.ShapeDtypeStruct((B, c_out, L), jnp.float32),
        grid_spec=pltpu.PrefetchScalarGridSpec(
            num_scalar_prefetch=0,
            grid=(B,),
            in_specs=[
                pl.BlockSpec((1, 1, L), lambda b: (b, 0, 0)),
                full_spec(w1), full_spec(b1), full_spec(s1), full_spec(t1),
                full_spec(w2_cat), full_spec(b2), full_spec(s2), full_spec(t2),
            ],
            out_specs=pl.BlockSpec((1, c_out, L), lambda b: (b, 0, 0)),
        ),
        # Batch rows are independent -> "parallel" (shards across TCs on v7x).
        compiler_params=pltpu.CompilerParams(
            dimension_semantics=("parallel",)),
    )(x_ncl, w1, b1, s1, t1, w2_cat, b2, s2, t2)


# ----------------------------------------------------------------------------
# FC stage kernel:
#   Linear(32*L, 1024) -> Linear(1024, 128) -> Dropout(0.2)[eval] -> Linear(128, 1)
# The big first matmul (HBM-bound stream of fc1_wt) is tiled over its
# contraction dim (last grid axis, "arbitrary") and optionally split over the
# fc1 output dim on a leading "parallel" grid axis (2 TensorCores on v7x).
# The two small tail matmuls run on the final reduction step per split; the
# per-split partial outputs are summed in the wrapper (all-linear tail).
# ----------------------------------------------------------------------------
def _fc_kernel(x_ref, w1_ref, b1_ref, w2_ref, b2_ref, w3_ref, b3_ref,
               o_ref, acc_ref):
    h = pl.program_id(0)
    k = pl.program_id(1)

    @pl.when(k == 0)
    def _():
        acc_ref[...] = jnp.zeros_like(acc_ref)

    acc_ref[...] += jnp.dot(x_ref[...], w1_ref[...],
                            preferred_element_type=jnp.float32)

    @pl.when(k == pl.num_programs(1) - 1)
    def _():
        # Tail-layer biases are added only on split 0 so that summing the
        # per-split partial outputs reproduces the full fc stack.
        flag = (h == 0).astype(jnp.float32)
        h1 = acc_ref[...] + b1_ref[...]                               # Linear(F, 1024) slice
        h2 = jnp.dot(h1, w2_ref[...],
                     preferred_element_type=jnp.float32) + flag * b2_ref[...]
        # Dropout(0.2) is identity in eval/inference mode.
        out = jnp.dot(h2, w3_ref[...],
                      preferred_element_type=jnp.float32) + flag * b3_ref[...]
        o_ref[0] = out


def _default_h_splits():
    # Split the fc1 output dim across the two TensorCores only on chips that
    # have them (v7x); single-TC chips (v5e/v6e) gain nothing from the split.
    try:
        kind = jax.devices()[0].device_kind.lower()
    except Exception:
        return 1
    return 2 if "v7" in kind else 1


def fc_stage(xf, w1t, b1, w2t, b2, w3t, b3, *, tk=2048, h_splits=None):
    B, F = xf.shape
    H1 = w1t.shape[1]
    H2 = w2t.shape[1]

    if h_splits is None:
        h_splits = _default_h_splits()
    if H1 % h_splits != 0:
        h_splits = 1
    Hs = H1 // h_splits

    # Pick the largest contraction tile <= tk that divides F (F = 32*L is a
    # multiple of 4096 for L a multiple of 128, so tk=2048 normally sticks).
    tk = min(tk, F)
    while F % tk != 0 and tk > 128:
        tk //= 2
    assert F % tk == 0, (F, tk)
    nk = F // tk

    partial = pl.pallas_call(
        _fc_kernel,
        out_shape=jax.ShapeDtypeStruct((h_splits, B, 1), jnp.float32),
        grid_spec=pltpu.PrefetchScalarGridSpec(
            num_scalar_prefetch=0,
            grid=(h_splits, nk),                       # reduction axis last
            in_specs=[
                pl.BlockSpec((B, tk), lambda h, k: (0, k)),
                pl.BlockSpec((tk, Hs), lambda h, k: (k, h)),
                pl.BlockSpec((1, Hs), lambda h, k: (0, h)),
                pl.BlockSpec((Hs, H2), lambda h, k: (h, 0)),
                pl.BlockSpec((1, H2), lambda h, k: (0, 0)),
                pl.BlockSpec((H2, 1), lambda h, k: (0, 0)),
                pl.BlockSpec((1, 1), lambda h, k: (0, 0)),
            ],
            out_specs=pl.BlockSpec((1, B, 1), lambda h, k: (h, 0, 0)),
            scratch_shapes=[pltpu.VMEM((B, Hs), jnp.float32)],
        ),
        compiler_params=pltpu.CompilerParams(
            dimension_semantics=("parallel", "arbitrary"),
            # ~16 MB double-buffered fc1 weight blocks + residents; 48 MiB is
            # safe on v5e/v6e (128 MiB physical) and v7x (64 MiB physical).
            vmem_limit_bytes=48 << 20),
    )(xf, w1t, b1, w2t, b2, w3t, b3)
    return jnp.sum(partial, axis=0)                    # (B, 1)


# ----------------------------------------------------------------------------
# Parameters (deterministic, synthetic) and full forward.
# ----------------------------------------------------------------------------
def init_params(key, total_length, h1=1024, h2=128):
    eps = 1e-5
    f_in = 32 * total_length
    ks = jax.random.split(key, 14)

    def n(k, shape, scale):
        return (scale * jax.random.normal(k, shape)).astype(jnp.float32)

    # Conv1d(1, 8, 3): weight (8, 1, 3) stored as (8, 3); bias as (8, 1).
    conv1_w = n(ks[0], (8, 3), 0.4)
    conv1_b = n(ks[1], (8, 1), 0.1)
    g1 = 1.0 + n(ks[2], (8, 1), 0.1)
    beta1 = n(ks[3], (8, 1), 0.1)
    # Eval BN with default running stats (mean=0, var=1), folded.
    bn1_scale = g1 / jnp.sqrt(1.0 + eps)
    bn1_shift = beta1

    # Conv1d(8, 32, 3): weight (32, 8, 3) = (out, in, k).
    # Kernel consumes it reshaped to (32, 24) with columns ordered tap-major,
    # in-channel minor: W_cat[o, k*8 + c] = conv2_w[o, c, k].
    conv2_w = n(ks[4], (32, 8, 3), 0.2)
    conv2_w_cat = jnp.transpose(conv2_w, (0, 2, 1)).reshape(32, 24)
    conv2_b = n(ks[5], (32, 1), 0.1)
    g2 = 1.0 + n(ks[6], (32, 1), 0.1)
    beta2 = n(ks[7], (32, 1), 0.1)
    bn2_scale = g2 / jnp.sqrt(1.0 + eps)
    bn2_shift = beta2

    # fc layers, stored transposed so the kernel computes x @ W^T + b.
    # TODO(synk): storing fc1_wt/fc2_wt as bf16 would halve the dominant HBM
    # stream (~2x on the fc stage) at a small numerics cost; kept f32 here to
    # match the f32 reference.
    fc1_wt = n(ks[8], (f_in, h1), 1.0 / (f_in ** 0.5))
    fc1_b = n(ks[9], (1, h1), 0.05)
    fc2_wt = n(ks[10], (h1, h2), 1.0 / (h1 ** 0.5))
    fc2_b = n(ks[11], (1, h2), 0.05)
    fc3_wt = n(ks[12], (h2, 1), 1.0 / (h2 ** 0.5))
    fc3_b = n(ks[13], (1, 1), 0.05)

    return dict(conv1_w=conv1_w, conv1_b=conv1_b,
                bn1_scale=bn1_scale, bn1_shift=bn1_shift,
                conv2_w=conv2_w, conv2_w_cat=conv2_w_cat, conv2_b=conv2_b,
                bn2_scale=bn2_scale, bn2_shift=bn2_shift,
                fc1_wt=fc1_wt, fc1_b=fc1_b, fc2_wt=fc2_wt, fc2_b=fc2_b,
                fc3_wt=fc3_wt, fc3_b=fc3_b)


def esm650m_convnet_comb_forward(wild_embedding, mutant_embedding, p):
    # torch.concat([wild, mutant], dim=2): (B,1,Lh) ++ (B,1,Lh) -> (B,1,L)
    x = jnp.concatenate([wild_embedding, mutant_embedding], axis=2)
    x = x.astype(jnp.float32)
    B = x.shape[0]
    conv_out = conv_stage(x, p["conv1_w"], p["conv1_b"],
                          p["bn1_scale"], p["bn1_shift"],
                          p["conv2_w_cat"], p["conv2_b"],
                          p["bn2_scale"], p["bn2_shift"])          # (B, 32, L)
    flat = conv_out.reshape(B, -1)                                 # (B, 32*L)
    return fc_stage(flat, p["fc1_wt"], p["fc1_b"],
                    p["fc2_wt"], p["fc2_b"], p["fc3_wt"], p["fc3_b"])


def _ref_forward(wild, mut, p):
    """Pure-JAX reference of the PyTorch forward (eval mode)."""
    hp = jax.lax.Precision.HIGHEST
    x = jnp.concatenate([wild, mut], axis=2)[:, 0, :]              # (B, L)
    B, L = x.shape
    xp = jnp.pad(x, ((0, 0), (1, 1)))
    taps = jnp.stack([xp[:, 0:-2], xp[:, 1:-1], xp[:, 2:]], axis=1)   # (B,3,L)
    h1 = jnp.einsum("ck,bkl->bcl", p["conv1_w"], taps, precision=hp)
    h1 = h1 + p["conv1_b"][None]
    h1 = jnp.maximum(h1, 0.0) * p["bn1_scale"][None] + p["bn1_shift"][None]
    h1p = jnp.pad(h1, ((0, 0), (0, 0), (1, 1)))
    taps2 = jnp.stack([h1p[:, :, 0:-2], h1p[:, :, 1:-1], h1p[:, :, 2:]], axis=2)
    h2 = jnp.einsum("ock,bckl->bol", p["conv2_w"], taps2, precision=hp)
    h2 = h2 + p["conv2_b"][None]
    h2 = jnp.maximum(h2, 0.0) * p["bn2_scale"][None] + p["bn2_shift"][None]
    flat = h2.reshape(B, -1)
    o = jnp.dot(flat, p["fc1_wt"], precision=hp) + p["fc1_b"]
    o = jnp.dot(o, p["fc2_wt"], precision=hp) + p["fc2_b"]
    o = jnp.dot(o, p["fc3_wt"], precision=hp) + p["fc3_b"]
    return o


if __name__ == "__main__":
    # Real model: each ESM-650M embedding row has length 2560 -> concat 5120,
    # fc input = 5120*32. Demo uses a smaller length (128 -> 256) but keeps the
    # exact module structure (conv 1->8->32, fc ->1024->128->1).
    B = 2
    L_HALF = 128
    L = 2 * L_HALF

    key = jax.random.PRNGKey(0)
    k_w, k_m, k_p = jax.random.split(key, 3)
    wild_embedding = jax.random.normal(k_w, (B, 1, L_HALF), dtype=jnp.float32)
    mutant_embedding = jax.random.normal(k_m, (B, 1, L_HALF), dtype=jnp.float32)
    params = init_params(k_p, L)

    out = esm650m_convnet_comb_forward(wild_embedding, mutant_embedding, params)
    out = jax.block_until_ready(out)
    assert out.shape == (B, 1), out.shape
    assert bool(jnp.all(jnp.isfinite(out)))

    # Reference uses HIGHEST precision; kernel uses the MXU's default f32 path,
    # so allow a slightly looser tolerance over the F=32*L contraction.
    ref = _ref_forward(wild_embedding, mutant_embedding, params)
    assert bool(jnp.allclose(out, ref, rtol=2e-2, atol=2e-2)), (out, ref)

    print("KERNEL_OK")
</pallas_src>

<mosaic_0001>
module attributes {stable_mosaic.version = 11 : i64} {
  func.func @_conv_kernel(%arg0: i32, %arg1: memref<1x1x256xf32, #tpu.memory_space<vmem>>, %arg2: memref<8x3xf32, #tpu.memory_space<vmem>>, %arg3: memref<8x1xf32, #tpu.memory_space<vmem>>, %arg4: memref<8x1xf32, #tpu.memory_space<vmem>>, %arg5: memref<8x1xf32, #tpu.memory_space<vmem>>, %arg6: memref<32x24xf32, #tpu.memory_space<vmem>>, %arg7: memref<32x1xf32, #tpu.memory_space<vmem>>, %arg8: memref<32x1xf32, #tpu.memory_space<vmem>>, %arg9: memref<32x1xf32, #tpu.memory_space<vmem>>, %arg10: memref<1x32x256xf32, #tpu.memory_space<vmem>>) attributes {dimension_semantics = [#tpu.dimension_semantics<parallel>], iteration_bounds = array<i64: 2>, scalar_prefetch = 0 : i64, scratch_operands = 0 : i64, tpu.core_type = #tpu.core_type<tc>, window_params = [{transform_indices = @transform_0, window_bounds = array<i64: 1, 1, 256>}, {pipeline_mode = #tpu.pipeline_mode<synchronous>, transform_indices = @transform_1, window_bounds = array<i64: 8, 3>}, {pipeline_mode = #tpu.pipeline_mode<synchronous>, transform_indices = @transform_2, window_bounds = array<i64: 8, 1>}, {pipeline_mode = #tpu.pipeline_mode<synchronous>, transform_indices = @transform_3, window_bounds = array<i64: 8, 1>}, {pipeline_mode = #tpu.pipeline_mode<synchronous>, transform_indices = @transform_4, window_bounds = array<i64: 8, 1>}, {pipeline_mode = #tpu.pipeline_mode<synchronous>, transform_indices = @transform_5, window_bounds = array<i64: 32, 24>}, {pipeline_mode = #tpu.pipeline_mode<synchronous>, transform_indices = @transform_6, window_bounds = array<i64: 32, 1>}, {pipeline_mode = #tpu.pipeline_mode<synchronous>, transform_indices = @transform_7, window_bounds = array<i64: 32, 1>}, {pipeline_mode = #tpu.pipeline_mode<synchronous>, transform_indices = @transform_8, window_bounds = array<i64: 32, 1>}, {transform_indices = @transform_9, window_bounds = array<i64: 1, 32, 256>}]} {
    %0 = tpu.iota {dimensions = array<i32: 1>} : vector<1x256xi32>
    %c0_i32 = arith.constant 0 : i32
    %1 = vector.broadcast %c0_i32 : i32 to vector<1x256xi32>
    %2 = arith.cmpi eq, %0, %1 : vector<1x256xi32>
    %c255_i32 = arith.constant 255 : i32
    %3 = vector.broadcast %c255_i32 : i32 to vector<1x256xi32>
    %4 = arith.cmpi eq, %0, %3 : vector<1x256xi32>
    %c0 = arith.constant 0 : index
    %c0_0 = arith.constant 0 : index
    %c0_1 = arith.constant 0 : index
    %5 = vector.load %arg1[%c0, %c0_0, %c0_1] : memref<1x1x256xf32, #tpu.memory_space<vmem>>, vector<1x1x256xf32>
    %6 = vector.shape_cast %5 : vector<1x1x256xf32> to vector<1x256xf32>
    %c1_i32 = arith.constant 1 : i32
    %7 = tpu.dynamic_rotate %6 by %c1_i32 dim 1 : vector<1x256xf32>, i32 -> vector<1x256xf32>
    %cst = arith.constant 0.000000e+00 : f32
    %8 = vector.broadcast %cst : f32 to vector<1x256xf32>
    %9 = arith.select %2, %8, %7 : vector<1x256xi1>, vector<1x256xf32>
    %c255_i32_2 = arith.constant 255 : i32
    %10 = tpu.dynamic_rotate %6 by %c255_i32_2 dim 1 : vector<1x256xf32>, i32 -> vector<1x256xf32>
    %cst_3 = arith.constant 0.000000e+00 : f32
    %11 = vector.broadcast %cst_3 : f32 to vector<1x256xf32>
    %12 = arith.select %4, %11, %10 : vector<1x256xi1>, vector<1x256xf32>
    %c0_4 = arith.constant 0 : index
    %c0_5 = arith.constant 0 : index
    %13 = vector.load %arg2[%c0_4, %c0_5] : memref<8x3xf32, #tpu.memory_space<vmem>>, vector<8x3xf32>
    %c0_6 = arith.constant 0 : index
    %c0_7 = arith.constant 0 : index
    %14 = vector.load %arg3[%c0_6, %c0_7] : memref<8x1xf32, #tpu.memory_space<vmem>>, vector<8x1xf32>
    %15 = vector.extract_strided_slice %13 {offsets = [0, 0], sizes = [8, 1], strides = [1, 1]} : vector<8x3xf32> to vector<8x1xf32>
    %16 = vector.broadcast %15 : vector<8x1xf32> to vector<8x256xf32>
    %17 = vector.broadcast %9 : vector<1x256xf32> to vector<8x256xf32>
    %18 = arith.mulf %16, %17 : vector<8x256xf32>
    %19 = vector.broadcast %14 : vector<8x1xf32> to vector<8x256xf32>
    %20 = arith.addf %19, %18 : vector<8x256xf32>
    %21 = vector.extract_strided_slice %13 {offsets = [0, 1], sizes = [8, 1], strides = [1, 1]} : vector<8x3xf32> to vector<8x1xf32>
    %22 = vector.broadcast %21 : vector<8x1xf32> to vector<8x256xf32>
    %23 = vector.broadcast %6 : vector<1x256xf32> to vector<8x256xf32>
    %24 = arith.mulf %22, %23 : vector<8x256xf32>
    %25 = arith.addf %20, %24 : vector<8x256xf32>
    %26 = vector.extract_strided_slice %13 {offsets = [0, 2], sizes = [8, 1], strides = [1, 1]} : vector<8x3xf32> to vector<8x1xf32>
    %27 = vector.broadcast %26 : vector<8x1xf32> to vector<8x256xf32>
    %28 = vector.broadcast %12 : vector<1x256xf32> to vector<8x256xf32>
    %29 = arith.mulf %27, %28 : vector<8x256xf32>
    %30 = arith.addf %25, %29 : vector<8x256xf32>
    %cst_8 = arith.constant 0.000000e+00 : f32
    %31 = vector.broadcast %cst_8 : f32 to vector<8x256xf32>
    %32 = arith.maximumf %30, %31 : vector<8x256xf32>
    %c0_9 = arith.constant 0 : index
    %c0_10 = arith.constant 0 : index
    %33 = vector.load %arg4[%c0_9, %c0_10] : memref<8x1xf32, #tpu.memory_space<vmem>>, vector<8x1xf32>
    %34 = vector.broadcast %33 : vector<8x1xf32> to vector<8x256xf32>
    %35 = arith.mulf %32, %34 : vector<8x256xf32>
    %c0_11 = arith.constant 0 : index
    %c0_12 = arith.constant 0 : index
    %36 = vector.load %arg5[%c0_11, %c0_12] : memref<8x1xf32, #tpu.memory_space<vmem>>, vector<8x1xf32>
    %37 = vector.broadcast %36 : vector<8x1xf32> to vector<8x256xf32>
    %38 = arith.addf %35, %37 : vector<8x256xf32>
    %c1_i32_13 = arith.constant 1 : i32
    %39 = tpu.dynamic_rotate %38 by %c1_i32_13 dim 1 : vector<8x256xf32>, i32 -> vector<8x256xf32>
    %cst_14 = arith.constant 0.000000e+00 : f32
    %40 = vector.shape_cast %2 : vector<1x256xi1> to vector<1x256xi1>
    %41 = vector.broadcast %40 : vector<1x256xi1> to vector<8x256xi1>
    %42 = vector.broadcast %cst_14 : f32 to vector<8x256xf32>
    %43 = arith.select %41, %42, %39 : vector<8x256xi1>, vector<8x256xf32>
    %c255_i32_15 = arith.constant 255 : i32
    %44 = tpu.dynamic_rotate %38 by %c255_i32_15 dim 1 : vector<8x256xf32>, i32 -> vector<8x256xf32>
    %cst_16 = arith.constant 0.000000e+00 : f32
    %45 = vector.shape_cast %4 : vector<1x256xi1> to vector<1x256xi1>
    %46 = vector.broadcast %45 : vector<1x256xi1> to vector<8x256xi1>
    %47 = vector.broadcast %cst_16 : f32 to vector<8x256xf32>
    %48 = arith.select %46, %47, %44 : vector<8x256xi1>, vector<8x256xf32>
    %49 = tpu.concatenate %43, %38, %48 in 0 : vector<8x256xf32>, vector<8x256xf32>, vector<8x256xf32> -> vector<24x256xf32>
    %c0_17 = arith.constant 0 : index
    %c0_18 = arith.constant 0 : index
    %50 = vector.load %arg7[%c0_17, %c0_18] : memref<32x1xf32, #tpu.memory_space<vmem>>, vector<32x1xf32>
    %c0_19 = arith.constant 0 : index
    %c0_20 = arith.constant 0 : index
    %51 = vector.load %arg6[%c0_19, %c0_20] : memref<32x24xf32, #tpu.memory_space<vmem>>, vector<32x24xf32>
    %cst_21 = arith.constant dense<0.000000e+00> : vector<32x256xf32>
    %52 = tpu.matmul %51, %49, %cst_21 {dimension_numbers = #tpu.dot_dimension_numbers<[1], [0], [0], [1], [0, 0, 1, 1], [], []>} : vector<32x24xf32>, vector<24x256xf32>, vector<32x256xf32> -> vector<32x256xf32>
    %53 = vector.broadcast %50 : vector<32x1xf32> to vector<32x256xf32>
    %54 = arith.addf %53, %52 : vector<32x256xf32>
    %cst_22 = arith.constant 0.000000e+00 : f32
    %55 = vector.broadcast %cst_22 : f32 to vector<32x256xf32>
    %56 = arith.maximumf %54, %55 : vector<32x256xf32>
    %c0_23 = arith.constant 0 : index
    %c0_24 = arith.constant 0 : index
    %57 = vector.load %arg8[%c0_23, %c0_24] : memref<32x1xf32, #tpu.memory_space<vmem>>, vector<32x1xf32>
    %58 = vector.broadcast %57 : vector<32x1xf32> to vector<32x256xf32>
    %59 = arith.mulf %56, %58 : vector<32x256xf32>
    %c0_25 = arith.constant 0 : index
    %c0_26 = arith.constant 0 : index
    %60 = vector.load %arg9[%c0_25, %c0_26] : memref<32x1xf32, #tpu.memory_space<vmem>>, vector<32x1xf32>
    %61 = vector.broadcast %60 : vector<32x1xf32> to vector<32x256xf32>
    %62 = arith.addf %59, %61 : vector<32x256xf32>
    %c0_27 = arith.constant 0 : index
    %c0_28 = arith.constant 0 : index
    %c0_29 = arith.constant 0 : index
    %63 = vector.load %arg10[%c0_27, %c0_28, %c0_29] : memref<1x32x256xf32, #tpu.memory_space<vmem>>, vector<1x32x256xf32>
    %64 = vector.shape_cast %63 : vector<1x32x256xf32> to vector<32x256xf32>
    %65 = vector.shape_cast %62 : vector<32x256xf32> to vector<1x32x256xf32>
    tpu.vector_store %arg10[%c0_27, %c0_28, %c0_29], %65 {strides = array<i32>} : memref<1x32x256xf32, #tpu.memory_space<vmem>>, vector<1x32x256xf32>,
    return
  }
  func.func @transform_0(%arg0: i32) -> (i32, i32, i32) {
    %c0_i32 = arith.constant 0 : i32
    %c0_i32_0 = arith.constant 0 : i32
    %c0_i32_1 = arith.constant 0 : i32
    return %arg0, %c0_i32, %c0_i32_0 : i32, i32, i32
  }
  func.func @transform_1(%arg0: i32) -> (i32, i32) {
    %c0_i32 = arith.constant 0 : i32
    %c0_i32_0 = arith.constant 0 : i32
    %c0_i32_1 = arith.constant 0 : i32
    return %c0_i32, %c0_i32_0 : i32, i32
  }
  func.func @transform_2(%arg0: i32) -> (i32, i32) {
    %c0_i32 = arith.constant 0 : i32
    %c0_i32_0 = arith.constant 0 : i32
    %c0_i32_1 = arith.constant 0 : i32
    return %c0_i32, %c0_i32_0 : i32, i32
  }
  func.func @transform_3(%arg0: i32) -> (i32, i32) {
    %c0_i32 = arith.constant 0 : i32
    %c0_i32_0 = arith.constant 0 : i32
    %c0_i32_1 = arith.constant 0 : i32
    return %c0_i32, %c0_i32_0 : i32, i32
  }
  func.func @transform_4(%arg0: i32) -> (i32, i32) {
    %c0_i32 = arith.constant 0 : i32
    %c0_i32_0 = arith.constant 0 : i32
    %c0_i32_1 = arith.constant 0 : i32
    return %c0_i32, %c0_i32_0 : i32, i32
  }
  func.func @transform_5(%arg0: i32) -> (i32, i32) {
    %c0_i32 = arith.constant 0 : i32
    %c0_i32_0 = arith.constant 0 : i32
    %c0_i32_1 = arith.constant 0 : i32
    return %c0_i32, %c0_i32_0 : i32, i32
  }
  func.func @transform_6(%arg0: i32) -> (i32, i32) {
    %c0_i32 = arith.constant 0 : i32
    %c0_i32_0 = arith.constant 0 : i32
    %c0_i32_1 = arith.constant 0 : i32
    return %c0_i32, %c0_i32_0 : i32, i32
  }
  func.func @transform_7(%arg0: i32) -> (i32, i32) {
    %c0_i32 = arith.constant 0 : i32
    %c0_i32_0 = arith.constant 0 : i32
    %c0_i32_1 = arith.constant 0 : i32
    return %c0_i32, %c0_i32_0 : i32, i32
  }
  func.func @transform_8(%arg0: i32) -> (i32, i32) {
    %c0_i32 = arith.constant 0 : i32
    %c0_i32_0 = arith.constant 0 : i32
    %c0_i32_1 = arith.constant 0 : i32
    return %c0_i32, %c0_i32_0 : i32, i32
  }
  func.func @transform_9(%arg0: i32) -> (i32, i32, i32) {
    %c0_i32 = arith.constant 0 : i32
    %c0_i32_0 = arith.constant 0 : i32
    %c0_i32_1 = arith.constant 0 : i32
    return %arg0, %c0_i32, %c0_i32_0 : i32, i32, i32
  }
}

</mosaic_0001>

<llo_original>
// kernel: tpu_custom_call.1
$region0: #{tpu_custom_call.1}
  #allocation0 [shape = 'u32[]', space=smem, size = 0x4, offset = 0x4, fixed_abs, tag = 'smem constant byte address 0x4 - core index']
  #allocation1 [shape = 'u32[72,128]{1,0:T(1,128)}', space=vmem, size = 0x9000, scoped, tag = 'internal scratch']
  %s0 = inlined_call_operand.vmem [shape: f32[2,1,256], index: 0, kind: input, shape index: {}]
  %s1 = inlined_call_operand.vmem [shape: f32[8,3], index: 1, kind: input, shape index: {}]
  %s2 = inlined_call_operand.vmem [shape: f32[8,1], index: 2, kind: input, shape index: {}]
  %s3 = inlined_call_operand.vmem [shape: f32[8,1], index: 3, kind: input, shape index: {}]
  %s4 = inlined_call_operand.vmem [shape: f32[8,1], index: 4, kind: input, shape index: {}]
  %s5 = inlined_call_operand.vmem [shape: f32[32,24], index: 5, kind: input, shape index: {}]
  %s6 = inlined_call_operand.vmem [shape: f32[32,1], index: 6, kind: input, shape index: {}]
  %s7 = inlined_call_operand.vmem [shape: f32[32,1], index: 7, kind: input, shape index: {}]
  %s8 = inlined_call_operand.vmem [shape: f32[32,1], index: 8, kind: input, shape index: {}]
  %s9 = inlined_call_operand.hbm [shape: f32[2,32,256], index: 9, kind: output, shape index: {}]
  %s10 = sld [smem:[#allocation0]]
  $region69: #{tpu_custom_call.1} parent=0
    _
  %s12 = ssub.s32 1, %s10
  %s13 = scalar_select 0, %s12, %s10
  $region1: #{tpu_custom_call.1} parent=0
    #allocation2 [shape = 'u8[65536]{0}', space=vmem, size = 0x10000, scoped, tag = 'output window, operand 0']
    #allocation3 [shape = 's32[2]{0}', space=sflag, size = 0x8, scoped, tag = 'scoped memory for tpu_custom_call.1']
    %14 = vsyncpa [#allocation3], 0
    %s15 = scalar_lea.sflag [#allocation3], 1
    %16 = vsyncpa %s15, 0
    loop: start=0, step=1, limit=4
    $region2: #{tpu_custom_call.1} parent=1 // loop_pre_header
      _
    $region3: #{tpu_custom_call.1} parent=1 // loop_header
      %s18 = sphi 0, %s22
      %p19 = scmp.ge.s32.totalorder %s18, 4
      %s28 = sphi 0, %s30
      %s31 = sphi 0, %s28
      %s32 = sphi 0, %s31
      %s48 = sphi 0, %s32
      %s52 = sphi 0, %s52
      %s54 = sphi 0, %s52
      %s55 = sphi 0, %s54
      %s69 = sphi 0, %s55
      %s73 = sphi 0, %s73
      %s75 = sphi 0, %s73
      %s76 = sphi 0, %s75
      %s90 = sphi 0, %s76
      %s94 = sphi 0, %s94
      %s96 = sphi 0, %s94
      %s97 = sphi 0, %s96
      %s111 = sphi 0, %s97
      %s115 = sphi 0, %s115
      %s117 = sphi 0, %s115
      %s118 = sphi 0, %s117
      %s132 = sphi 0, %s118
      %s136 = sphi 0, %s136
      %s138 = sphi 0, %s136
      %s139 = sphi 0, %s138
      %s153 = sphi 0, %s139
      %s157 = sphi 0, %s157
      %s159 = sphi 0, %s157
      %s160 = sphi 0, %s159
      %s174 = sphi 0, %s160
      %s178 = sphi 0, %s178
      %s180 = sphi 0, %s178
      %s181 = sphi 0, %s180
      %s195 = sphi 0, %s181
      %s199 = sphi 0, %s199
      %s201 = sphi 0, %s199
      %s202 = sphi 0, %s201
      %s216 = sphi 0, %s202
      %s222 = sphi 0, %s224
      %s225 = sphi 0, %s222
      %s226 = sphi 0, %s225
      %s242 = sphi 0, %s226
    $region4: #{tpu_custom_call.1} parent=1 // loop_header_branch
      %21 = sbr.rel (%p19) target = $region8
    $region5: #{tpu_custom_call.1} parent=1 // loop_body
      %s23 = ssub.s32 %s18, 1
      %s24 = ssub.s32 %s18, 2
      %s25 = sadd.s32 %s18, 1
      %s26 = ssub.s32 %s18, %s25
      %p27 = scmp.eq.s32.totalorder %s26, 0
      %s29 = sadd.s32 %s28, 1
      %s30 = scalar_select %p27, %s28, %s29
      %p33 = pneg %p27
      %p34 = scmp.eq.s32.totalorder %s18, 1
      %p35 = por %p33, %p34
      %p36 = scmp.ne.s32.totalorder %s28, %s31
      %p37 = scmp.eq.s32.totalorder %s18, 0
      %p38 = por %p36, %p37
      %p39 = scmp.ne.s32.totalorder %s28, %s31
      %p40 = scmp.eq.s32.totalorder %s23, 1
      %p41 = por %p39, %p40
      %p42 = scmp.ne.s32.totalorder %s31, %s32
      %p43 = scmp.eq.s32.totalorder %s23, 0
      %p44 = por %p42, %p43
      %p45 = scmp.ne.s32.totalorder %s31, %s32
      %p46 = scmp.eq.s32.totalorder %s24, 1
      %p47 = por %p45, %p46
      %p49 = scmp.ne.s32.totalorder %s32, %s48
      %p50 = scmp.eq.s32.totalorder %s24, 0
      %p51 = por %p49, %p50
      %s53 = sadd.s32 %s52, 1
      %p56 = scmp.eq.s32.totalorder %s18, 1
      %p57 = scmp.ne.s32.totalorder %s52, %s54
      %p58 = scmp.eq.s32.totalorder %s18, 0
      %p59 = por %p57, %p58
      %p60 = scmp.ne.s32.totalorder %s52, %s54
      %p61 = scmp.eq.s32.totalorder %s23, 1
      %p62 = por %p60, %p61
      %p63 = scmp.ne.s32.totalorder %s54, %s55
      %p64 = scmp.eq.s32.totalorder %s23, 0
      %p65 = por %p63, %p64
      %p66 = scmp.ne.s32.totalorder %s54, %s55
      %p67 = scmp.eq.s32.totalorder %s24, 1
      %p68 = por %p66, %p67
      %p70 = scmp.ne.s32.totalorder %s55, %s69
      %p71 = scmp.eq.s32.totalorder %s24, 0
      %p72 = por %p70, %p71
      %s74 = sadd.s32 %s73, 1
      %p77 = scmp.eq.s32.totalorder %s18, 1
      %p78 = scmp.ne.s32.totalorder %s73, %s75
      %p79 = scmp.eq.s32.totalorder %s18, 0
      %p80 = por %p78, %p79
      %p81 = scmp.ne.s32.totalorder %s73, %s75
      %p82 = scmp.eq.s32.totalorder %s23, 1
      %p83 = por %p81, %p82
      %p84 = scmp.ne.s32.totalorder %s75, %s76
      %p85 = scmp.eq.s32.totalorder %s23, 0
      %p86 = por %p84, %p85
      %p87 = scmp.ne.s32.totalorder %s75, %s76
      %p88 = scmp.eq.s32.totalorder %s24, 1
      %p89 = por %p87, %p88
      %p91 = scmp.ne.s32.totalorder %s76, %s90
      %p92 = scmp.eq.s32.totalorder %s24, 0
      %p93 = por %p91, %p92
      %s95 = sadd.s32 %s94, 1
      %p98 = scmp.eq.s32.totalorder %s18, 1
      %p99 = scmp.ne.s32.totalorder %s94, %s96
      %p100 = scmp.eq.s32.totalorder %s18, 0
      %p101 = por %p99, %p100
      %p102 = scmp.ne.s32.totalorder %s94, %s96
      %p103 = scmp.eq.s32.totalorder %s23, 1
      %p104 = por %p102, %p103
      %p105 = scmp.ne.s32.totalorder %s96, %s97
      %p106 = scmp.eq.s32.totalorder %s23, 0
      %p107 = por %p105, %p106
      %p108 = scmp.ne.s32.totalorder %s96, %s97
      %p109 = scmp.eq.s32.totalorder %s24, 1
      %p110 = por %p108, %p109
      %p112 = scmp.ne.s32.totalorder %s97, %s111
      %p113 = scmp.eq.s32.totalorder %s24, 0
      %p114 = por %p112, %p113
      %s116 = sadd.s32 %s115, 1
      %p119 = scmp.eq.s32.totalorder %s18, 1
      %p120 = scmp.ne.s32.totalorder %s115, %s117
      %p121 = scmp.eq.s32.totalorder %s18, 0
      %p122 = por %p120, %p121
      %p123 = scmp.ne.s32.totalorder %s115, %s117
      %p124 = scmp.eq.s32.totalorder %s23, 1
      %p125 = por %p123, %p124
      %p126 = scmp.ne.s32.totalorder %s117, %s118
      %p127 = scmp.eq.s32.totalorder %s23, 0
      %p128 = por %p126, %p127
      %p129 = scmp.ne.s32.totalorder %s117, %s118
      %p130 = scmp.eq.s32.totalorder %s24, 1
      %p131 = por %p129, %p130
      %p133 = scmp.ne.s32.totalorder %s118, %s132
      %p134 = scmp.eq.s32.totalorder %s24, 0
      %p135 = por %p133, %p134
      %s137 = sadd.s32 %s136, 1
      %p140 = scmp.eq.s32.totalorder %s18, 1
      %p141 = scmp.ne.s32.totalorder %s136, %s138
      %p142 = scmp.eq.s32.totalorder %s18, 0
      %p143 = por %p141, %p142
      %p144 = scmp.ne.s32.totalorder %s136, %s138
      %p145 = scmp.eq.s32.totalorder %s23, 1
      %p146 = por %p144, %p145
      %p147 = scmp.ne.s32.totalorder %s138, %s139
      %p148 = scmp.eq.s32.totalorder %s23, 0
      %p149 = por %p147, %p148
      %p150 = scmp.ne.s32.totalorder %s138, %s139
      %p151 = scmp.eq.s32.totalorder %s24, 1
      %p152 = por %p150, %p151
      %p154 = scmp.ne.s32.totalorder %s139, %s153
      %p155 = scmp.eq.s32.totalorder %s24, 0
      %p156 = por %p154, %p155
      %s158 = sadd.s32 %s157, 1
      %p161 = scmp.eq.s32.totalorder %s18, 1
      %p162 = scmp.ne.s32.totalorder %s157, %s159
      %p163 = scmp.eq.s32.totalorder %s18, 0
      %p164 = por %p162, %p163
      %p165 = scmp.ne.s32.totalorder %s157, %s159
      %p166 = scmp.eq.s32.totalorder %s23, 1
      %p167 = por %p165, %p166
      %p168 = scmp.ne.s32.totalorder %s159, %s160
      %p169 = scmp.eq.s32.totalorder %s23, 0
      %p170 = por %p168, %p169
      %p171 = scmp.ne.s32.totalorder %s159, %s160
      %p172 = scmp.eq.s32.totalorder %s24, 1
      %p173 = por %p171, %p172
      %p175 = scmp.ne.s32.totalorder %s160, %s174
      %p176 = scmp.eq.s32.totalorder %s24, 0
      %p177 = por %p175, %p176
      %s179 = sadd.s32 %s178, 1
      %p182 = scmp.eq.s32.totalorder %s18, 1
      %p183 = scmp.ne.s32.totalorder %s178, %s180
      %p184 = scmp.eq.s32.totalorder %s18, 0
      %p185 = por %p183, %p184
      %p186 = scmp.ne.s32.totalorder %s178, %s180
      %p187 = scmp.eq.s32.totalorder %s23, 1
      %p188 = por %p186, %p187
      %p189 = scmp.ne.s32.totalorder %s180, %s181
      %p190 = scmp.eq.s32.totalorder %s23, 0
      %p191 = por %p189, %p190
      %p192 = scmp.ne.s32.totalorder %s180, %s181
      %p193 = scmp.eq.s32.totalorder %s24, 1
      %p194 = por %p192, %p193
      %p196 = scmp.ne.s32.totalorder %s181, %s195
      %p197 = scmp.eq.s32.totalorder %s24, 0
      %p198 = por %p196, %p197
      %s200 = sadd.s32 %s199, 1
      %p203 = scmp.eq.s32.totalorder %s18, 1
      %p204 = scmp.ne.s32.totalorder %s199, %s201
      %p205 = scmp.eq.s32.totalorder %s18, 0
      %p206 = por %p204, %p205
      %p207 = scmp.ne.s32.totalorder %s199, %s201
      %p208 = scmp.eq.s32.totalorder %s23, 1
      %p209 = por %p207, %p208
      %p210 = scmp.ne.s32.totalorder %s201, %s202
      %p211 = scmp.eq.s32.totalorder %s23, 0
      %p212 = por %p210, %p211
      %p213 = scmp.ne.s32.totalorder %s201, %s202
      %p214 = scmp.eq.s32.totalorder %s24, 1
      %p215 = por %p213, %p214
      %p217 = scmp.ne.s32.totalorder %s202, %s216
      %p218 = scmp.eq.s32.totalorder %s24, 0
      %p219 = por %p217, %p218
      %s220 = ssub.s32 %s18, %s25
      %p221 = scmp.eq.s32.totalorder %s220, 0
      %s223 = sadd.s32 %s222, 1
      %s224 = scalar_select %p221, %s222, %s223
      %p227 = pneg %p221
      %p228 = scmp.eq.s32.totalorder %s18, 1
      %p229 = por %p227, %p228
      %p230 = scmp.ne.s32.totalorder %s222, %s225
      %p231 = scmp.eq.s32.totalorder %s18, 0
      %p232 = por %p230, %p231
      %p233 = scmp.ne.s32.totalorder %s222, %s225
      %p234 = scmp.eq.s32.totalorder %s23, 1
      %p235 = por %p233, %p234
      %p236 = scmp.ne.s32.totalorder %s225, %s226
      %p237 = scmp.eq.s32.totalorder %s23, 0
      %p238 = por %p236, %p237
      %p239 = scmp.ne.s32.totalorder %s225, %s226
      %p240 = scmp.eq.s32.totalorder %s24, 1
      %p241 = por %p239, %p240
      %p243 = scmp.ne.s32.totalorder %s226, %s242
      %p244 = scmp.eq.s32.totalorder %s24, 0
      %p245 = por %p243, %p244
      %p246 = scmp.le.s32.totalorder 1, %s18
      %p247 = scmp.lt.s32.totalorder %s18, 3
      %p248 = pnand %p246, %p247
      %p249 = pneg %p248
      // Predicated region
      $region9: #{tpu_custom_call.1} parent=5 // pred_check
        _
      $region10: #{tpu_custom_call.1} parent=5 // pred_check_branch
        %251 = sbr.rel (%p248) target = $region12
      $region11: #{tpu_custom_call.1} parent=5 // pred_region
        %s252 = ssub.s32 %s18, 1
        // Predicated region
        $region13: #{tpu_custom_call.1} parent=11 // pred_check
          %p253 = pneg %p65
        $region14: #{tpu_custom_call.1} parent=11 // pred_check_branch
          %255 = sbr.rel (%p253) target = $region16
        $region15: #{tpu_custom_call.1} parent=11 // pred_region
          _
        $region16: #{tpu_custom_call.1} parent=11 // pred_fallthru
          _
        // Predicated region
        $region17: #{tpu_custom_call.1} parent=11 // pred_check
          %p256 = pneg %p86
        $region18: #{tpu_custom_call.1} parent=11 // pred_check_branch
          %258 = sbr.rel (%p256) target = $region20
        $region19: #{tpu_custom_call.1} parent=11 // pred_region
          _
        $region20: #{tpu_custom_call.1} parent=11 // pred_fallthru
          _
        // Predicated region
        $region21: #{tpu_custom_call.1} parent=11 // pred_check
          %p259 = pneg %p107
        $region22: #{tpu_custom_call.1} parent=11 // pred_check_branch
          %261 = sbr.rel (%p259) target = $region24
        $region23: #{tpu_custom_call.1} parent=11 // pred_region
          _
        $region24: #{tpu_custom_call.1} parent=11 // pred_fallthru
          _
        // Predicated region
        $region25: #{tpu_custom_call.1} parent=11 // pred_check
          %p262 = pneg %p128
        $region26: #{tpu_custom_call.1} parent=11 // pred_check_branch
          %264 = sbr.rel (%p262) target = $region28
        $region27: #{tpu_custom_call.1} parent=11 // pred_region
          _
        $region28: #{tpu_custom_call.1} parent=11 // pred_fallthru
          _
        // Predicated region
        $region29: #{tpu_custom_call.1} parent=11 // pred_check
          %p265 = pneg %p149
        $region30: #{tpu_custom_call.1} parent=11 // pred_check_branch
          %267 = sbr.rel (%p265) target = $region32
        $region31: #{tpu_custom_call.1} parent=11 // pred_region
          _
        $region32: #{tpu_custom_call.1} parent=11 // pred_fallthru
          _
        // Predicated region
        $region33: #{tpu_custom_call.1} parent=11 // pred_check
          %p268 = pneg %p170
        $region34: #{tpu_custom_call.1} parent=11 // pred_check_branch
          %270 = sbr.rel (%p268) target = $region36
        $region35: #{tpu_custom_call.1} parent=11 // pred_region
          _
        $region36: #{tpu_custom_call.1} parent=11 // pred_fallthru
          _
        // Predicated region
        $region37: #{tpu_custom_call.1} parent=11 // pred_check
          %p271 = pneg %p191
        $region38: #{tpu_custom_call.1} parent=11 // pred_check_branch
          %273 = sbr.rel (%p271) target = $region40
        $region39: #{tpu_custom_call.1} parent=11 // pred_region
          _
        $region40: #{tpu_custom_call.1} parent=11 // pred_fallthru
          _
        // Predicated region
        $region41: #{tpu_custom_call.1} parent=11 // pred_check
          %p274 = pneg %p212
        $region42: #{tpu_custom_call.1} parent=11 // pred_check_branch
          %276 = sbr.rel (%p274) target = $region44
        $region43: #{tpu_custom_call.1} parent=11 // pred_region
          _
        $region44: #{tpu_custom_call.1} parent=11 // pred_fallthru
          _
      $region12: #{tpu_custom_call.1} parent=5 // pred_fallthru
        _
      %p277 = scmp.lt.s32.totalorder %s18, 2
      // Predicated region
      $region45: #{tpu_custom_call.1} parent=5 // pred_check
        %p278 = pneg %p277
      $region46: #{tpu_custom_call.1} parent=5 // pred_check_branch
        %280 = sbr.rel (%p278) target = $region48
      $region47: #{tpu_custom_call.1} parent=5 // pred_region
        // Predicated region
        $region49: #{tpu_custom_call.1} parent=47 // pred_check
          %p281 = pneg %p38
        $region50: #{tpu_custom_call.1} parent=47 // pred_check_branch
          %283 = sbr.rel (%p281) target = $region52
        $region51: #{tpu_custom_call.1} parent=47 // pred_region
          %p284 = scmp.lt.s32.totalorder %s18, 1
          %s285 = scalar_select %p284, %s18, 1
          %s286 = smul.addr %s285, 2
          %s287 = scalar_lea.vmem %s0, %s286
        $region52: #{tpu_custom_call.1} parent=47 // pred_fallthru
          _
      $region48: #{tpu_custom_call.1} parent=5 // pred_fallthru
        _
      %p288 = scmp.le.s32.totalorder 1, %s18
      %p289 = scmp.lt.s32.totalorder %s18, 3
      %p290 = pnand %p288, %p289
      %p291 = pneg %p290
      // Predicated region
      $region53: #{tpu_custom_call.1} parent=5 // pred_check
        _
      $region54: #{tpu_custom_call.1} parent=5 // pred_check_branch
        %293 = sbr.rel (%p290) target = $region56
      $region55: #{tpu_custom_call.1} parent=5 // pred_region
        %s294 = ssub.s32 %s18, 1
        %p295 = scmp.lt.s32.totalorder %s23, 1
        %s296 = scalar_select %p295, %s23, 1
        %s297 = smul.addr %s296, 2
        %s298 = scalar_lea.vmem %s0, %s297
        %p299 = pneg %p44
        %p300 = pneg %p41
        %p301 = pneg %p65
        %p302 = pneg %p62
        %p303 = pneg %p86
        %p304 = pneg %p83
        %p305 = pneg %p107
        %p306 = pneg %p104
        %p307 = pneg %p128
        %p308 = pneg %p125
        %p309 = pneg %p149
        %p310 = pneg %p146
        %p311 = pneg %p170
        %p312 = pneg %p167
        %p313 = pneg %p191
        %p314 = pneg %p188
        %p315 = pneg %p212
        %p316 = pneg %p209
        %p317 = pneg %p238
        %p318 = pneg %p235
        %s319 = sand.u32 %s225, 1
        %s320 = scalar_lea.sflag [#allocation3], %s319
        %s321 = sand.u32 %s225, 1
        %s322 = smul.addr %s321, 64
        %s323 = scalar_lea.vmem [#allocation2], %s322
        %p324 = scmp.lt.s32.totalorder %s23, 1
        %s325 = scalar_select %p324, %s23, 1
        %s326 = smul.addr %s325, 2
        %s327 = scalar_lea.vmem %s0, %s326
        %v328 = vlaneseq
        %v329 = vand.u32 %v328, 127
        %v330 = vadd.s32 %v329, 128
        %vm331 = vcmp.eq.s32.totalorder %v329, 0
        %vm332 = vcmp.eq.s32.totalorder %v330, 0
        %vm333 = vcmp.eq.s32.totalorder %v329, 255
        %vm334 = vcmp.eq.s32.totalorder %v330, 255
        %v335 = vld [vmem:[%s327] sm:$0x3]
        %v337 = vperm.slane %v335, 0
        %v338 = vperm.slane %v335, 1
        %341 = vrot.lane.b32.xlu0 %v337, 1
        %v342 = vpop.permute.xlu0 %341
        %343 = vrot.lane.b32.xlu0 %v338, 1
        %v344 = vpop.permute.xlu0 %343
        %vm345 = vcmp.lt.s32.totalorder %v329, 1
        %v346 = vsel %vm345, %v342, %v344
        %v347 = vsel %vm345, %v344, %v342
        %v348 = vsel %vm331, 0.0, %v347
        %v349 = vsel %vm332, 0.0, %v346
        %350 = vrot.lane.b32.xlu0 %v337, 127
        %v351 = vpop.permute.xlu0 %350
        %352 = vrot.lane.b32.xlu0 %v338, 127
        %v353 = vpop.permute.xlu0 %352
        %vm354 = vcmp.lt.s32.totalorder %v329, 127
        %v355 = vsel %vm354, %v351, %v353
        %v356 = vsel %vm354, %v353, %v351
        %v357 = vsel %vm333, 0.0, %v355
        %v358 = vsel %vm334, 0.0, %v356
        %v359 = vld [vmem:[%s1] sm:$0xff]
        %v360 = vld [vmem:[%s2] sm:$0xff]
        %362 = vset.pattern.permute.xlu0 0
        %363 = vperm.xlu0 %362, %v359
        %v364 = vpop.permute.xlu0 %363
        %v366 = vperm.slane %v348, 0
        %v367 = vperm.slane %v349, 0
        %v368 = vmul.f32 %v364, %v366
        %v369 = vmul.f32 %v364, %v367
        %371 = vset.pattern.permute.xlu0 0
        %372 = vperm.xlu0 %371, %v360
        %v373 = vpop.permute.xlu0 %372
        %v375 = vadd.f32 %v373, %v368
        %v376 = vadd.f32 %v373, %v369
        %377 = vset.pattern.permute.xlu0 1
        %378 = vperm.xlu0 %377, %v359
        %v379 = vpop.permute.xlu0 %378
        %v381 = vmul.f32 %v379, %v337
        %v382 = vmul.f32 %v379, %v338
        %v383 = vadd.f32 %v375, %v381
        %v384 = vadd.f32 %v376, %v382
        %385 = vset.pattern.permute.xlu0 2
        %386 = vperm.xlu0 %385, %v359
        %v387 = vpop.permute.xlu0 %386
        %v389 = vperm.slane %v357, 0
        %v390 = vperm.slane %v358, 0
        %v391 = vmul.f32 %v387, %v389
        %v392 = vmul.f32 %v387, %v390
        %v393 = vadd.f32 %v383, %v391
        %v394 = vadd.f32 %v384, %v392
        %v395 = vmax.f32 %v393, 0.0
        %v396 = vmax.f32 %v394, 0.0
        %v397 = vld [vmem:[%s3] sm:$0xff]
        %399 = vset.pattern.permute.xlu0 0
        %400 = vperm.xlu0 %399, %v397
        %v401 = vpop.permute.xlu0 %400
        %v403 = vmul.f32 %v395, %v401
        %v404 = vmul.f32 %v396, %v401
        %v405 = vld [vmem:[%s4] sm:$0xff]
        %407 = vset.pattern.permute.xlu0 0
        %408 = vperm.xlu0 %407, %v405
        %v409 = vpop.permute.xlu0 %408
        %v411 = vadd.f32 %v403, %v409
        %v412 = vadd.f32 %v404, %v409
        %413 = vrot.lane.b32.xlu0 %v411, 1
        %v414 = vpop.permute.xlu0 %413
        %415 = vrot.lane.b32.xlu0 %v412, 1
        %v416 = vpop.permute.xlu0 %415
        %v417 = vsel %vm345, %v414, %v416
        %v418 = vsel %vm345, %v416, %v414
        %v419 = vsel %vm331, 1, 0
        %v420 = vsel %vm332, 1, 0
        %vm421 = vcmp.eq.s32.totalorder %v419, 1
        %vm422 = vcmp.eq.s32.totalorder %v420, 1
        %v423 = vsel %vm421, 0.0, %v418
        %v424 = vsel %vm422, 0.0, %v417
        %425 = vrot.lane.b32.xlu0 %v411, 127
        %v426 = vpop.permute.xlu0 %425
        %427 = vrot.lane.b32.xlu0 %v412, 127
        %v428 = vpop.permute.xlu0 %427
        %v429 = vsel %vm354, %v426, %v428
        %v430 = vsel %vm354, %v428, %v426
        %v431 = vsel %vm333, 1, 0
        %v432 = vsel %vm334, 1, 0
        %vm433 = vcmp.eq.s32.totalorder %v431, 1
        %vm434 = vcmp.eq.s32.totalorder %v432, 1
        %v435 = vsel %vm433, 0.0, %v429
        %v436 = vsel %vm434, 0.0, %v430
        %v437 = vld [vmem:[%s6] sm:$0xff]
        %v438 = vld [vmem:[%s6 + $0x8] sm:$0xff]
        %v439 = vld [vmem:[%s6 + $0x10] sm:$0xff]
        %v440 = vld [vmem:[%s6 + $0x18] sm:$0xff]
        %v441 = vld [vmem:[%s5] sm:$0xff]
        %v442 = vld [vmem:[%s5 + $0x8] sm:$0xff]
        %v443 = vld [vmem:[%s5 + $0x10] sm:$0xff]
        %v444 = vld [vmem:[%s5 + $0x18] sm:$0xff]
        %vm445 = vcmask 195584
        %v447 = vsel %vm445, %v441, 0
        %v450 = vsel %vm445, %v442, 0
        %v453 = vsel %vm445, %v443, 0
        %v456 = vsel %vm445, %v444, 0
        %458 = vmatpush.msra.mxu0 0.0
        %459 = vmatpush.msra.mxu0 0.0
        %460 = vmatpush.msra.mxu0 0.0
        %461 = vmatpush.msra.mxu0 0.0
        %462 = vmatpush.msra.mxu0 0.0
        %463 = vmatpush.msra.mxu0 0.0
        %464 = vmatpush.msra.mxu0 0.0
        %465 = vmatpush.msra.mxu0 0.0
        %466 = vmatpush.msra.mxu0 0.0
        %467 = vmatpush.msra.mxu0 0.0
        %468 = vmatpush.msra.mxu0 0.0
        %469 = vmatpush.msra.mxu0 0.0
        %470 = vmatpush.msra.mxu0 0.0
        %471 = vmatpush.msra.mxu0 %v435
        %472 = vmatpush.msra.mxu0 %v411
        %473 = vmatpush.msra.mxu0 %v423
        %474 = vmatmul.f32.gmra.mxu0 %v447
        %v475 = vpop.f32.mrf.mxu0
        %v476 = vadd.f32 0.0, %v475
        %477 = vmatmul.f32.gmra.mxu0 %v450
        %v478 = vpop.f32.mrf.mxu0
        %v479 = vadd.f32 0.0, %v478
        %480 = vmatmul.f32.gmra.mxu0 %v453
        %v481 = vpop.f32.mrf.mxu0
        %v482 = vadd.f32 0.0, %v481
        %483 = vmatmul.f32.gmra.mxu0 %v456
        %v484 = vpop.f32.mrf.mxu0
        %v485 = vadd.f32 0.0, %v484
        %486 = vdwg.mxu0
        %487 = vmatpush.msra.mxu0 0.0
        %488 = vmatpush.msra.mxu0 0.0
        %489 = vmatpush.msra.mxu0 0.0
        %490 = vmatpush.msra.mxu0 0.0
        %491 = vmatpush.msra.mxu0 0.0
        %492 = vmatpush.msra.mxu0 0.0
        %493 = vmatpush.msra.mxu0 0.0
        %494 = vmatpush.msra.mxu0 0.0
        %495 = vmatpush.msra.mxu0 0.0
        %496 = vmatpush.msra.mxu0 0.0
        %497 = vmatpush.msra.mxu0 0.0
        %498 = vmatpush.msra.mxu0 0.0
        %499 = vmatpush.msra.mxu0 0.0
        %500 = vmatpush.msra.mxu0 %v436
        %501 = vmatpush.msra.mxu0 %v412
        %502 = vmatpush.msra.mxu0 %v424
        %503 = vmatmul.f32.gmra.mxu0 %v447
        %v504 = vpop.f32.mrf.mxu0
        %v505 = vadd.f32 0.0, %v504
        %506 = vmatmul.f32.gmra.mxu0 %v450
        %v507 = vpop.f32.mrf.mxu0
        %v508 = vadd.f32 0.0, %v507
        %509 = vmatmul.f32.gmra.mxu0 %v453
        %v510 = vpop.f32.mrf.mxu0
        %v511 = vadd.f32 0.0, %v510
        %512 = vmatmul.f32.gmra.mxu0 %v456
        %v513 = vpop.f32.mrf.mxu0
        %v514 = vadd.f32 0.0, %v513
        %515 = vdwg.mxu0
        %517 = vset.pattern.permute.xlu0 0
        %518 = vperm.xlu0 %517, %v437
        %v519 = vpop.permute.xlu0 %518
        %522 = vset.pattern.permute.xlu0 0
        %523 = vperm.xlu0 %522, %v438
        %v524 = vpop.permute.xlu0 %523
        %527 = vset.pattern.permute.xlu0 0
        %528 = vperm.xlu0 %527, %v439
        %v529 = vpop.permute.xlu0 %528
        %532 = vset.pattern.permute.xlu0 0
        %533 = vperm.xlu0 %532, %v440
        %v534 = vpop.permute.xlu0 %533
        %v536 = vadd.f32 %v519, %v476
        %v537 = vadd.f32 %v519, %v505
        %v538 = vadd.f32 %v524, %v479
        %v539 = vadd.f32 %v524, %v508
        %v540 = vadd.f32 %v529, %v482
        %v541 = vadd.f32 %v529, %v511
        %v542 = vadd.f32 %v534, %v485
        %v543 = vadd.f32 %v534, %v514
        %v544 = vmax.f32 %v536, 0.0
        %v545 = vmax.f32 %v537, 0.0
        %v546 = vmax.f32 %v538, 0.0
        %v547 = vmax.f32 %v539, 0.0
        %v548 = vmax.f32 %v540, 0.0
        %v549 = vmax.f32 %v541, 0.0
        %v550 = vmax.f32 %v542, 0.0
        %v551 = vmax.f32 %v543, 0.0
        %v552 = vld [vmem:[%s7] sm:$0xff]
        %v553 = vld [vmem:[%s7 + $0x8] sm:$0xff]
        %v554 = vld [vmem:[%s7 + $0x10] sm:$0xff]
        %v555 = vld [vmem:[%s7 + $0x18] sm:$0xff]
        %557 = vset.pattern.permute.xlu0 0
        %558 = vperm.xlu0 %557, %v552
        %v559 = vpop.permute.xlu0 %558
        %562 = vset.pattern.permute.xlu0 0
        %563 = vperm.xlu0 %562, %v553
        %v564 = vpop.permute.xlu0 %563
        %567 = vset.pattern.permute.xlu0 0
        %568 = vperm.xlu0 %567, %v554
        %v569 = vpop.permute.xlu0 %568
        %572 = vset.pattern.permute.xlu0 0
        %573 = vperm.xlu0 %572, %v555
        %v574 = vpop.permute.xlu0 %573
        %v576 = vmul.f32 %v544, %v559
        %v577 = vmul.f32 %v545, %v559
        %v578 = vmul.f32 %v546, %v564
        %v579 = vmul.f32 %v547, %v564
        %v580 = vmul.f32 %v548, %v569
        %v581 = vmul.f32 %v549, %v569
        %v582 = vmul.f32 %v550, %v574
        %v583 = vmul.f32 %v551, %v574
        %v584 = vld [vmem:[%s8] sm:$0xff]
        %v585 = vld [vmem:[%s8 + $0x8] sm:$0xff]
        %v586 = vld [vmem:[%s8 + $0x10] sm:$0xff]
        %v587 = vld [vmem:[%s8 + $0x18] sm:$0xff]
        %589 = vset.pattern.permute.xlu0 0
        %590 = vperm.xlu0 %589, %v584
        %v591 = vpop.permute.xlu0 %590
        %594 = vset.pattern.permute.xlu0 0
        %595 = vperm.xlu0 %594, %v585
        %v596 = vpop.permute.xlu0 %595
        %599 = vset.pattern.permute.xlu0 0
        %600 = vperm.xlu0 %599, %v586
        %v601 = vpop.permute.xlu0 %600
        %604 = vset.pattern.permute.xlu0 0
        %605 = vperm.xlu0 %604, %v587
        %v606 = vpop.permute.xlu0 %605
        %v608 = vadd.f32 %v576, %v591
        %v609 = vadd.f32 %v577, %v591
        %v610 = vadd.f32 %v578, %v596
        %v611 = vadd.f32 %v579, %v596
        %v612 = vadd.f32 %v580, %v601
        %v613 = vadd.f32 %v581, %v601
        %v614 = vadd.f32 %v582, %v606
        %v615 = vadd.f32 %v583, %v606
        %616 = vst [vmem:[%s323] sm:$0xff] %v608
        %617 = vst [vmem:[%s323 + $0x8] sm:$0xff] %v609
        %618 = vst [vmem:[%s323 + $0x10] sm:$0xff] %v610
        %619 = vst [vmem:[%s323 + $0x18] sm:$0xff] %v611
        %620 = vst [vmem:[%s323 + $0x20] sm:$0xff] %v612
        %621 = vst [vmem:[%s323 + $0x28] sm:$0xff] %v613
        %622 = vst [vmem:[%s323 + $0x30] sm:$0xff] %v614
        %623 = vst [vmem:[%s323 + $0x38] sm:$0xff] %v615
        %s624 = sand.u32 %s225, 1
        %s625 = scalar_lea.sflag [#allocation3], %s624
        %s626 = sand.u32 %s225, 1
        %s627 = smul.addr %s626, 64
        %s628 = scalar_lea.vmem [#allocation2], %s627
        // Predicated region
        $region57: #{tpu_custom_call.1} parent=55 // pred_check
          %p629 = pneg %p235
        $region58: #{tpu_custom_call.1} parent=55 // pred_check_branch
          %631 = sbr.rel (%p629) target = $region60
        $region59: #{tpu_custom_call.1} parent=55 // pred_region
          %633 = vsyncadd %s625, 0
          %s634 = smul.addr %s23, 8
          %s635 = smul.addr %s634, 8
          %s636 = scalar_lea.hbm %s9, %s635
          %s637 = sshll.u32 %s628, 4
          %s638 = int_to_ptr.vmem [resolvable:$true] %s637
          %s639 = sshll.u32 %s636, 4
          %s640 = int_to_ptr.hbm [resolvable:$true] %s639
          %645 = dma.vmem_to_hbm [thread:$0]  %s638, 1024, %s640, %s625, 256, 256, 16
        $region60: #{tpu_custom_call.1} parent=55 // pred_fallthru
          _
      $region56: #{tpu_custom_call.1} parent=5 // pred_fallthru
        _
      %p646 = scmp.le.s32.totalorder 2, %s18
      // Predicated region
      $region61: #{tpu_custom_call.1} parent=5 // pred_check
        %p647 = pneg %p646
      $region62: #{tpu_custom_call.1} parent=5 // pred_check_branch
        %649 = sbr.rel (%p647) target = $region64
      $region63: #{tpu_custom_call.1} parent=5 // pred_region
        %s650 = ssub.s32 %s18, 2
        // Predicated region
        $region65: #{tpu_custom_call.1} parent=63 // pred_check
          %p651 = pneg %p241
        $region66: #{tpu_custom_call.1} parent=63 // pred_check_branch
          %653 = sbr.rel (%p651) target = $region68
        $region67: #{tpu_custom_call.1} parent=63 // pred_region
          %s654 = sand.u32 %s226, 1
          %s655 = scalar_lea.sflag [#allocation3], %s654
          %s656 = sand.u32 %s226, 1
          %s657 = smul.addr %s656, 64
          %s658 = scalar_lea.vmem [#allocation2], %s657
          %660 = dma.done %s655, 1024
        $region68: #{tpu_custom_call.1} parent=63 // pred_fallthru
          _
      $region64: #{tpu_custom_call.1} parent=5 // pred_fallthru
        _
    $region6: #{tpu_custom_call.1} parent=1 // loop_footer
      %s22 = sadd.s32 1, %s18
    $region7: #{tpu_custom_call.1} parent=1 // loop_footer_branch
      %17 = sbr.rel target = $region3
    $region8: #{tpu_custom_call.1} parent=1 // loop_exit
      _
    %661 = vsyncpa [#allocation3], 1
    %s662 = scalar_lea.sflag [#allocation3], 1
    %663 = vsyncpa %s662, 1

</llo_original>
